<compile_context>
chip_gen: v5e
topology: v5e:2x2
jax: 0.10.0
libtpu: 0.0.40
codegen_flags: <defaults>
</compile_context>

<pallas_src>
import functools

import jax
import jax.numpy as jnp
from jax import lax
from jax.experimental import pallas as pl
from jax.experimental.pallas import tpu as pltpu


def _round_up(x, m):
    return ((x + m - 1) // m) * m


def _custom_loss_kernel(p_ref, y_ref, out_ref, *, boost, valid_rows, need_mask):
    """Partial weighted-BCE sum for one row-block.

    p_ref:   (2, RT, LW) predictions (channels 0 and 1 only), native dtype.
    y_ref:   (C, RT, LW) labels (all channels, typically bf16).
    out_ref: (1, 8, 128) lane-dense f32 partial-sum block for this grid step.
    """
    rt = p_ref.shape[1]
    lw = p_ref.shape[2]
    n_ch = y_ref.shape[0]
    G = 16                       # sublane group: one bf16 tile / two f32 tiles
    n_groups = rt // G

    # Global row offset of this block (for masking the ragged last block).
    row0 = pl.program_id(0) * rt
    rows_left = valid_rows - row0
    # Hoisted out of the loop (JAX does not CSE broadcast/iota).
    row_iota = lax.broadcasted_iota(jnp.int32, (G, lw), 0)

    def bce(p, y):
        # PyTorch binary_cross_entropy clamps the logs at -100.
        logp = jnp.maximum(jnp.log(p), -100.0)
        log1mp = jnp.maximum(jnp.log(1.0 - p), -100.0)
        return -(y * logp + (1.0 - y) * log1mp)

    def group(g, acc):
        r = pl.multiple_of(g * G, G)
        p0 = p_ref[0, pl.ds(r, G), :].astype(jnp.float32)
        p1 = p_ref[1, pl.ds(r, G), :].astype(jnp.float32)
        y0 = y_ref[0, pl.ds(r, G), :].astype(jnp.float32)
        y1 = y_ref[1, pl.ds(r, G), :].astype(jnp.float32)

        # weights = max over all label channels * boost + 1
        # (max over the small leading axis = a few VPU maxes, no XLU).
        # NOTE: for large C (>= ~6) this tail max could be precomputed in the
        # wrapper relayout and passed as a single extra plane to cut DMA.
        w = jnp.maximum(y0, y1)
        for c in range(2, n_ch):
            w = jnp.maximum(w, y_ref[c, pl.ds(r, G), :].astype(jnp.float32))
        w = w * boost + 1.0

        contrib = w * (bce(p0, y0) + bce(p1, y1))
        if need_mask:
            # Zero out garbage rows of the (possibly partial) last grid block.
            contrib = jnp.where(row_iota + r < rows_left, contrib, 0.0)
        return acc + contrib

    acc = jnp.zeros((G, lw), jnp.float32)
    if n_groups <= 32:
        acc = lax.fori_loop(0, n_groups, group, acc, unroll=True)
    else:
        acc = lax.fori_loop(0, n_groups, group, acc)

    # Fold the (16, LW) accumulator down to one (8, 128) tile with
    # tile-aligned VPU adds only; the final scalar reduce happens in XLA.
    acc8 = acc[0:8, :] + acc[8:16, :]
    folded = acc8[:, 0:128]
    for k in range(1, lw // 128):
        folded = folded + acc8[:, k * 128:(k + 1) * 128]
    out_ref[0] = folded


def custom_loss(full_predictions, full_labels, *, relative_offset=0.2,
                boost=2.0, lane_tile=256, row_tile=2048, labels_bf16=True,
                core_parallel=False):
    """JAX/Pallas equivalent of CustomLoss.forward."""
    assert lane_tile % 128 == 0 and row_tile % 16 == 0
    B, T, C = full_labels.shape
    assert C >= 2, "CustomLoss needs at least 2 channels"

    tfs = int(T * relative_offset)
    Tp = T - tfs
    N = B * Tp

    label_dtype = jnp.bfloat16 if labels_bf16 else full_labels.dtype

    # Channel-major, lane-dense planes.  Time slice + channel slice + the bf16
    # label downcast all fold into the single XLA relayout copy.
    p01 = jnp.transpose(full_predictions[:, tfs:, :2], (2, 0, 1)).reshape(2, N)
    y = jnp.transpose(full_labels[:, tfs:, :], (2, 0, 1)) \
           .astype(label_dtype).reshape(C, N)

    # Pad the flattened axis only up to a whole number of 16-row sublane
    # groups; (p=1, y=1) padding contributes exactly 0.  The ragged remainder
    # against row_tile is masked in-kernel, so padding stays tiny and the pad
    # op vanishes entirely when N is already a multiple of 16*lane_tile.
    n_pad_target = _round_up(max(N, 1), 16 * lane_tile)
    pad = n_pad_target - N
    if pad:
        p01 = jnp.pad(p01, ((0, 0), (0, pad)), constant_values=1.0)
        y = jnp.pad(y, ((0, 0), (0, pad)), constant_values=1.0)
    M = n_pad_target // lane_tile            # always a multiple of 16
    p01 = p01.reshape(2, M, lane_tile)
    y = y.reshape(C, M, lane_tile)

    row_block = min(row_tile, M)             # multiple of 16 either way
    num_blocks = -(-M // row_block)
    need_mask = (M % row_block) != 0

    kernel = functools.partial(_custom_loss_kernel, boost=float(boost),
                               valid_rows=M, need_mask=need_mask)

    pred_bytes = jnp.dtype(p01.dtype).itemsize
    lab_bytes = jnp.dtype(y.dtype).itemsize
    block_bytes = (2 * pred_bytes + C * lab_bytes) * row_block * lane_tile
    # Double-buffered inputs + output + slack; explicit so the same kernel is
    # portable across v5e (16 MiB default scoped VMEM) and larger v7x tiles.
    vmem_limit = int(max(2 * block_bytes + (4 << 20), 16 << 20))

    # On v7x set core_parallel=True so the independent row-blocks are split
    # across the two TensorCores; plain "parallel" elsewhere.
    dim_sem = (pltpu.CORE_PARALLEL if core_parallel else pltpu.PARALLEL,)

    partials = pl.pallas_call(
        kernel,
        out_shape=jax.ShapeDtypeStruct((num_blocks, 8, 128), jnp.float32),
        grid=(num_blocks,),
        in_specs=[
            pl.BlockSpec((2, row_block, lane_tile), lambda i: (0, i, 0)),
            pl.BlockSpec((C, row_block, lane_tile), lambda i: (0, i, 0)),
        ],
        out_specs=pl.BlockSpec((1, 8, 128), lambda i: (i, 0, 0)),
        compiler_params=pltpu.CompilerParams(
            dimension_semantics=dim_sem,
            vmem_limit_bytes=vmem_limit),
    )(p01, y)

    # mean over B*Tp per-channel loss, then average of the two channels.
    return jnp.sum(partials) / (2.0 * N)


def _reference_loss(full_predictions, full_labels, *, relative_offset=0.2,
                    boost=2.0):
    """Pure-JAX reference mirroring the PyTorch semantics."""
    T = full_labels.shape[1]
    tfs = int(T * relative_offset)
    p = full_predictions[:, tfs:, :].astype(jnp.float32)
    y = full_labels[:, tfs:, :].astype(jnp.float32)
    w = jnp.max(y, axis=2) * boost + 1.0
    logp = jnp.maximum(jnp.log(p), -100.0)
    log1mp = jnp.maximum(jnp.log(1.0 - p), -100.0)
    bce = -(y * logp + (1.0 - y) * log1mp)
    n = p.shape[0] * p.shape[1]
    l1 = jnp.sum(w * bce[:, :, 0]) / n
    l2 = jnp.sum(w * bce[:, :, 1]) / n
    return (l1 + l2) / 2.0


if __name__ == "__main__":
    RELATIVE_OFFSET = 0.2
    BOOST = 2.0  # stands in for args.add_weight

    key = jax.random.PRNGKey(0)
    k1, k2, k3, k4 = jax.random.split(key, 4)

    # Test 1: small module-like shape (single grid block, default tiles).
    B, T, C = 2, 16, 4
    preds1 = jax.nn.sigmoid(jax.random.normal(k1, (B, T, C), dtype=jnp.float32))
    labels1 = (jax.random.uniform(k2, (B, T, C)) > 0.5).astype(jnp.float32)
    out1 = jax.block_until_ready(
        custom_loss(preds1, labels1, relative_offset=RELATIVE_OFFSET, boost=BOOST))
    ref1 = _reference_loss(preds1, labels1,
                           relative_offset=RELATIVE_OFFSET, boost=BOOST)
    assert jnp.allclose(out1, ref1, rtol=1e-4, atol=1e-6), (out1, ref1)

    # Test 2: small tiles to exercise the multi-block grid, the partial last
    # block (in-kernel row mask) and ragged padding.
    B2, T2, C2 = 5, 1024, 4
    preds2 = jax.nn.sigmoid(jax.random.normal(k3, (B2, T2, C2), dtype=jnp.float32))
    labels2 = (jax.random.uniform(k4, (B2, T2, C2)) > 0.5).astype(jnp.float32)
    out2 = jax.block_until_ready(
        custom_loss(preds2, labels2, relative_offset=RELATIVE_OFFSET, boost=BOOST,
                    lane_tile=128, row_tile=32))
    ref2 = _reference_loss(preds2, labels2,
                           relative_offset=RELATIVE_OFFSET, boost=BOOST)
    assert jnp.allclose(out2, ref2, rtol=1e-4, atol=1e-6), (out2, ref2)

    print("KERNEL_OK")
</pallas_src>

<mosaic_0001>
module attributes {stable_mosaic.version = 11 : i64} {
  func.func @_custom_loss_kernel(%arg0: i32, %arg1: memref<2x16x256xf32, #tpu.memory_space<vmem>>, %arg2: memref<4x16x256xbf16, #tpu.memory_space<vmem>>, %arg3: memref<1x8x128xf32, #tpu.memory_space<vmem>>) attributes {dimension_semantics = [#tpu.dimension_semantics<parallel>], iteration_bounds = array<i64: 1>, scalar_prefetch = 0 : i64, scratch_operands = 0 : i64, tpu.core_type = #tpu.core_type<tc>, window_params = [{transform_indices = @transform_0, window_bounds = array<i64: 2, 16, 256>}, {transform_indices = @transform_1, window_bounds = array<i64: 4, 16, 256>}, {transform_indices = @transform_2, window_bounds = array<i64: 1, 8, 128>}]} {
    %cst = arith.constant 0.000000e+00 : f32
    %0 = vector.broadcast %cst : f32 to vector<16x256xf32>
    %c0_i32 = arith.constant 0 : i32
    %c16_i32 = arith.constant 16 : i32
    %1 = arith.muli %c0_i32, %c16_i32 : i32
    %2 = tpu.assume_multiple %1, 16 : i32
    %c0 = arith.constant 0 : index
    %3 = arith.index_cast %2 : i32 to index
    %c0_0 = arith.constant 0 : index
    %4 = vector.load %arg1[%c0, %3, %c0_0] : memref<2x16x256xf32, #tpu.memory_space<vmem>>, vector<1x16x256xf32>
    %5 = vector.shape_cast %4 : vector<1x16x256xf32> to vector<16x256xf32>
    %c1 = arith.constant 1 : index
    %6 = arith.index_cast %2 : i32 to index
    %c0_1 = arith.constant 0 : index
    %7 = vector.load %arg1[%c1, %6, %c0_1] : memref<2x16x256xf32, #tpu.memory_space<vmem>>, vector<1x16x256xf32>
    %8 = vector.shape_cast %7 : vector<1x16x256xf32> to vector<16x256xf32>
    %c0_2 = arith.constant 0 : index
    %9 = arith.index_cast %2 : i32 to index
    %c0_3 = arith.constant 0 : index
    %10 = vector.load %arg2[%c0_2, %9, %c0_3] : memref<4x16x256xbf16, #tpu.memory_space<vmem>>, vector<1x16x256xbf16>
    %11 = vector.shape_cast %10 : vector<1x16x256xbf16> to vector<16x256xbf16>
    %12 = arith.extf %11 : vector<16x256xbf16> to vector<16x256xf32>
    %c1_4 = arith.constant 1 : index
    %13 = arith.index_cast %2 : i32 to index
    %c0_5 = arith.constant 0 : index
    %14 = vector.load %arg2[%c1_4, %13, %c0_5] : memref<4x16x256xbf16, #tpu.memory_space<vmem>>, vector<1x16x256xbf16>
    %15 = vector.shape_cast %14 : vector<1x16x256xbf16> to vector<16x256xbf16>
    %16 = arith.extf %15 : vector<16x256xbf16> to vector<16x256xf32>
    %17 = arith.maximumf %12, %16 : vector<16x256xf32>
    %c2 = arith.constant 2 : index
    %18 = arith.index_cast %2 : i32 to index
    %c0_6 = arith.constant 0 : index
    %19 = vector.load %arg2[%c2, %18, %c0_6] : memref<4x16x256xbf16, #tpu.memory_space<vmem>>, vector<1x16x256xbf16>
    %20 = vector.shape_cast %19 : vector<1x16x256xbf16> to vector<16x256xbf16>
    %21 = arith.extf %20 : vector<16x256xbf16> to vector<16x256xf32>
    %22 = arith.maximumf %17, %21 : vector<16x256xf32>
    %c3 = arith.constant 3 : index
    %23 = arith.index_cast %2 : i32 to index
    %c0_7 = arith.constant 0 : index
    %24 = vector.load %arg2[%c3, %23, %c0_7] : memref<4x16x256xbf16, #tpu.memory_space<vmem>>, vector<1x16x256xbf16>
    %25 = vector.shape_cast %24 : vector<1x16x256xbf16> to vector<16x256xbf16>
    %26 = arith.extf %25 : vector<16x256xbf16> to vector<16x256xf32>
    %27 = arith.maximumf %22, %26 : vector<16x256xf32>
    %cst_8 = arith.constant 2.000000e+00 : f32
    %28 = vector.broadcast %cst_8 : f32 to vector<16x256xf32>
    %29 = arith.mulf %27, %28 : vector<16x256xf32>
    %cst_9 = arith.constant 1.000000e+00 : f32
    %30 = vector.broadcast %cst_9 : f32 to vector<16x256xf32>
    %31 = arith.addf %29, %30 : vector<16x256xf32>
    %32 = math.log %5 : vector<16x256xf32>
    %cst_10 = arith.constant -1.000000e+02 : f32
    %33 = vector.broadcast %cst_10 : f32 to vector<16x256xf32>
    %34 = arith.maximumf %32, %33 : vector<16x256xf32>
    %cst_11 = arith.constant 1.000000e+00 : f32
    %35 = vector.broadcast %cst_11 : f32 to vector<16x256xf32>
    %36 = arith.subf %35, %5 : vector<16x256xf32>
    %37 = math.log %36 : vector<16x256xf32>
    %cst_12 = arith.constant -1.000000e+02 : f32
    %38 = vector.broadcast %cst_12 : f32 to vector<16x256xf32>
    %39 = arith.maximumf %37, %38 : vector<16x256xf32>
    %40 = arith.mulf %12, %34 : vector<16x256xf32>
    %cst_13 = arith.constant 1.000000e+00 : f32
    %41 = vector.broadcast %cst_13 : f32 to vector<16x256xf32>
    %42 = arith.subf %41, %12 : vector<16x256xf32>
    %43 = arith.mulf %42, %39 : vector<16x256xf32>
    %44 = arith.addf %40, %43 : vector<16x256xf32>
    %cst_14 = arith.constant 0.000000e+00 : f32
    %45 = vector.broadcast %cst_14 : f32 to vector<16x256xf32>
    %46 = arith.subf %45, %44 : vector<16x256xf32>
    %47 = math.log %8 : vector<16x256xf32>
    %cst_15 = arith.constant -1.000000e+02 : f32
    %48 = vector.broadcast %cst_15 : f32 to vector<16x256xf32>
    %49 = arith.maximumf %47, %48 : vector<16x256xf32>
    %cst_16 = arith.constant 1.000000e+00 : f32
    %50 = vector.broadcast %cst_16 : f32 to vector<16x256xf32>
    %51 = arith.subf %50, %8 : vector<16x256xf32>
    %52 = math.log %51 : vector<16x256xf32>
    %cst_17 = arith.constant -1.000000e+02 : f32
    %53 = vector.broadcast %cst_17 : f32 to vector<16x256xf32>
    %54 = arith.maximumf %52, %53 : vector<16x256xf32>
    %55 = arith.mulf %16, %49 : vector<16x256xf32>
    %cst_18 = arith.constant 1.000000e+00 : f32
    %56 = vector.broadcast %cst_18 : f32 to vector<16x256xf32>
    %57 = arith.subf %56, %16 : vector<16x256xf32>
    %58 = arith.mulf %57, %54 : vector<16x256xf32>
    %59 = arith.addf %55, %58 : vector<16x256xf32>
    %cst_19 = arith.constant 0.000000e+00 : f32
    %60 = vector.broadcast %cst_19 : f32 to vector<16x256xf32>
    %61 = arith.subf %60, %59 : vector<16x256xf32>
    %62 = arith.addf %46, %61 : vector<16x256xf32>
    %63 = arith.mulf %31, %62 : vector<16x256xf32>
    %64 = arith.addf %0, %63 : vector<16x256xf32>
    %c1_i32 = arith.constant 1 : i32
    %65 = vector.extract_strided_slice %64 {offsets = [0, 0], sizes = [8, 256], strides = [1, 1]} : vector<16x256xf32> to vector<8x256xf32>
    %66 = vector.extract_strided_slice %64 {offsets = [8, 0], sizes = [8, 256], strides = [1, 1]} : vector<16x256xf32> to vector<8x256xf32>
    %67 = arith.addf %65, %66 : vector<8x256xf32>
    %68 = vector.extract_strided_slice %67 {offsets = [0, 0], sizes = [8, 128], strides = [1, 1]} : vector<8x256xf32> to vector<8x128xf32>
    %69 = vector.extract_strided_slice %67 {offsets = [0, 128], sizes = [8, 128], strides = [1, 1]} : vector<8x256xf32> to vector<8x128xf32>
    %70 = arith.addf %68, %69 : vector<8x128xf32>
    %c0_20 = arith.constant 0 : index
    %c0_21 = arith.constant 0 : index
    %c0_22 = arith.constant 0 : index
    %71 = vector.load %arg3[%c0_20, %c0_21, %c0_22] : memref<1x8x128xf32, #tpu.memory_space<vmem>>, vector<1x8x128xf32>
    %72 = vector.shape_cast %71 : vector<1x8x128xf32> to vector<8x128xf32>
    %73 = vector.shape_cast %70 : vector<8x128xf32> to vector<1x8x128xf32>
    tpu.vector_store %arg3[%c0_20, %c0_21, %c0_22], %73 {strides = array<i32>} : memref<1x8x128xf32, #tpu.memory_space<vmem>>, vector<1x8x128xf32>,
    return
  }
  func.func @transform_0(%arg0: i32) -> (i32, i32, i32) {
    %c0_i32 = arith.constant 0 : i32
    %c0_i32_0 = arith.constant 0 : i32
    %c0_i32_1 = arith.constant 0 : i32
    return %c0_i32, %arg0, %c0_i32_0 : i32, i32, i32
  }
  func.func @transform_1(%arg0: i32) -> (i32, i32, i32) {
    %c0_i32 = arith.constant 0 : i32
    %c0_i32_0 = arith.constant 0 : i32
    %c0_i32_1 = arith.constant 0 : i32
    return %c0_i32, %arg0, %c0_i32_0 : i32, i32, i32
  }
  func.func @transform_2(%arg0: i32) -> (i32, i32, i32) {
    %c0_i32 = arith.constant 0 : i32
    %c0_i32_0 = arith.constant 0 : i32
    %c0_i32_1 = arith.constant 0 : i32
    return %arg0, %c0_i32, %c0_i32_0 : i32, i32, i32
  }
}

</mosaic_0001>

<llo_original>
// kernel: tpu_custom_call.1
$region0: #{tpu_custom_call.1}
  #allocation0 [shape = 'u32[]', space=smem, size = 0x4, offset = 0x4, fixed_abs, tag = 'smem constant byte address 0x4 - core index']
  #allocation1 [shape = 'u32[72,128]{1,0:T(1,128)}', space=vmem, size = 0x9000, scoped, tag = 'internal scratch']
  %s0 = inlined_call_operand.hbm [shape: f32[2,16,256], index: 0, kind: input, shape index: {}]
  %s1 = inlined_call_operand.hbm [shape: bf16[4,16,256], index: 1, kind: input, shape index: {}]
  %s2 = inlined_call_operand.hbm [shape: f32[1,8,128], index: 2, kind: output, shape index: {}]
  %s3 = sld [smem:[#allocation0]]
  $region26: #{tpu_custom_call.1} parent=0
    _
  %s5 = ssub.s32 1, %s3
  %s6 = scalar_select 0, %s5, %s3
  $region1: #{tpu_custom_call.1} parent=0
    #allocation2 [shape = 'u8[32768]{0}', space=vmem, size = 0x8000, scoped, tag = 'input window, operand 0, single buffered']
    #allocation3 [shape = 's32[1]{0}', space=sflag, size = 0x4, scoped, tag = 'scoped memory for tpu_custom_call.1']
    #allocation4 [shape = 's32[1]{0}', space=sflag, size = 0x4, scoped, tag = 'scoped memory for tpu_custom_call.1']
    #allocation5 [shape = 'u8[32768]{0}', space=vmem, size = 0x8000, scoped, tag = 'input window, operand 1, single buffered']
    #allocation6 [shape = 's32[1]{0}', space=sflag, size = 0x4, scoped, tag = 'scoped memory for tpu_custom_call.1']
    #allocation7 [shape = 'u8[4096]{0}', space=vmem, size = 0x1000, scoped, tag = 'output window, operand 0, single buffered']
    %7 = vsyncpa [#allocation3], 0
    %8 = vsyncpa [#allocation6], 0
    %9 = vsyncpa [#allocation4], 0
    // Predicated region
    $region2: #{tpu_custom_call.1} parent=1 // pred_check
      _
    $region3: #{tpu_custom_call.1} parent=1 // pred_check_branch
      %11 = sbr.rel (0) target = $region5
    $region4: #{tpu_custom_call.1} parent=1 // pred_region
      %13 = vsyncadd [#allocation3], 0
      %s14 = sshll.u32 %s0, 4
      %s15 = int_to_ptr.hbm [resolvable:$true] %s14
      %s16 = sshll.u32 [#allocation2], 4
      %s17 = int_to_ptr.vmem [resolvable:$true] %s16
      %22 = dma.hbm_to_vmem [thread:$0]  %s15, 1024, %s17, [#allocation3], 256, 256, 16
    $region5: #{tpu_custom_call.1} parent=1 // pred_fallthru
      _
    // Predicated region
    $region6: #{tpu_custom_call.1} parent=1 // pred_check
      _
    $region7: #{tpu_custom_call.1} parent=1 // pred_check_branch
      %24 = sbr.rel (0) target = $region9
    $region8: #{tpu_custom_call.1} parent=1 // pred_region
      %26 = vsyncadd [#allocation6], 0
      %s27 = sshll.u32 %s1, 4
      %s28 = int_to_ptr.hbm [resolvable:$true] %s27
      %s29 = sshll.u32 [#allocation5], 4
      %s30 = int_to_ptr.vmem [resolvable:$true] %s29
      %35 = dma.hbm_to_vmem [thread:$0]  %s28, 1024, %s30, [#allocation6], 128, 128, 8
    $region9: #{tpu_custom_call.1} parent=1 // pred_fallthru
      _
    // Predicated region
    $region10: #{tpu_custom_call.1} parent=1 // pred_check
      _
    $region11: #{tpu_custom_call.1} parent=1 // pred_check_branch
      %37 = sbr.rel (0) target = $region13
    $region12: #{tpu_custom_call.1} parent=1 // pred_region
      %39 = dma.done [#allocation3], 1024
    $region13: #{tpu_custom_call.1} parent=1 // pred_fallthru
      _
    // Predicated region
    $region14: #{tpu_custom_call.1} parent=1 // pred_check
      _
    $region15: #{tpu_custom_call.1} parent=1 // pred_check_branch
      %41 = sbr.rel (0) target = $region17
    $region16: #{tpu_custom_call.1} parent=1 // pred_region
      %43 = dma.done [#allocation6], 1024
    $region17: #{tpu_custom_call.1} parent=1 // pred_fallthru
      _
    %s44 = smul.u32 0, 2
    %s45 = smul.addr %s44, 8
    %s46 = scalar_lea.vmem [#allocation2], %s45
    %v47 = vld [vmem:[%s46] sm:$0xff]
    %v48 = vld [vmem:[%s46 + $0x8] sm:$0xff]
    %v49 = vld [vmem:[%s46 + $0x10] sm:$0xff]
    %v50 = vld [vmem:[%s46 + $0x18] sm:$0xff]
    %s51 = sadd.s32 %s44, 4
    %s52 = smul.addr %s51, 8
    %s53 = scalar_lea.vmem [#allocation2], %s52
    %v54 = vld [vmem:[%s53] sm:$0xff]
    %v55 = vld [vmem:[%s53 + $0x8] sm:$0xff]
    %v56 = vld [vmem:[%s53 + $0x10] sm:$0xff]
    %v57 = vld [vmem:[%s53 + $0x18] sm:$0xff]
    %s58 = smul.addr %s44, 4
    %s59 = scalar_lea.vmem [#allocation5], %s58
    %v60 = vld [vmem:[%s59] sm:$0xff]
    %v61 = vld [vmem:[%s59 + $0x8] sm:$0xff]
    %v62 = vunpack.c.l.bf16 %v60
    %v63 = vunpack.c.h.bf16 %v60
    %v64 = vunpack.c.l.bf16 %v61
    %v65 = vunpack.c.h.bf16 %v61
    %s66 = smul.addr %s51, 4
    %s67 = scalar_lea.vmem [#allocation5], %s66
    %v68 = vld [vmem:[%s67] sm:$0xff]
    %v69 = vld [vmem:[%s67 + $0x8] sm:$0xff]
    %v70 = vunpack.c.l.bf16 %v68
    %v71 = vunpack.c.h.bf16 %v68
    %v72 = vunpack.c.l.bf16 %v69
    %v73 = vunpack.c.h.bf16 %v69
    %v74 = vmax.f32 %v62, %v70
    %v75 = vmax.f32 %v63, %v71
    %v76 = vmax.f32 %v64, %v72
    %v77 = vmax.f32 %v65, %v73
    %s78 = sadd.s32 %s44, 8
    %s79 = smul.addr %s78, 4
    %s80 = scalar_lea.vmem [#allocation5], %s79
    %v81 = vld [vmem:[%s80] sm:$0xff]
    %v82 = vld [vmem:[%s80 + $0x8] sm:$0xff]
    %v83 = vunpack.c.l.bf16 %v81
    %v84 = vunpack.c.h.bf16 %v81
    %v85 = vunpack.c.l.bf16 %v82
    %v86 = vunpack.c.h.bf16 %v82
    %v87 = vmax.f32 %v74, %v83
    %v88 = vmax.f32 %v75, %v84
    %v89 = vmax.f32 %v76, %v85
    %v90 = vmax.f32 %v77, %v86
    %s91 = sadd.s32 %s44, 12
    %s92 = smul.addr %s91, 4
    %s93 = scalar_lea.vmem [#allocation5], %s92
    %v94 = vld [vmem:[%s93] sm:$0xff]
    %v95 = vld [vmem:[%s93 + $0x8] sm:$0xff]
    %v96 = vunpack.c.l.bf16 %v94
    %v97 = vunpack.c.h.bf16 %v94
    %v98 = vunpack.c.l.bf16 %v95
    %v99 = vunpack.c.h.bf16 %v95
    %v100 = vmax.f32 %v87, %v96
    %v101 = vmax.f32 %v88, %v97
    %v102 = vmax.f32 %v89, %v98
    %v103 = vmax.f32 %v90, %v99
    %v104 = vmul.f32 %v100, 2.0
    %v105 = vmul.f32 %v101, 2.0
    %v106 = vmul.f32 %v102, 2.0
    %v107 = vmul.f32 %v103, 2.0
    %v108 = vadd.f32 %v104, 1.0
    %v109 = vadd.f32 %v105, 1.0
    %v110 = vadd.f32 %v106, 1.0
    %v111 = vadd.f32 %v107, 1.0
    %v112 = vlog2.pop %v47
    %v113 = vmul.f32 %v112, 0.6931472
    %v114 = vlog2.pop %v48
    %v115 = vmul.f32 %v114, 0.6931472
    %v116 = vlog2.pop %v49
    %v117 = vmul.f32 %v116, 0.6931472
    %v118 = vlog2.pop %v50
    %v119 = vmul.f32 %v118, 0.6931472
    %v120 = vmax.f32 %v113, -100.0
    %v121 = vmax.f32 %v115, -100.0
    %v122 = vmax.f32 %v117, -100.0
    %v123 = vmax.f32 %v119, -100.0
    %v124 = vsub.f32 1.0, %v47
    %v125 = vsub.f32 1.0, %v48
    %v126 = vsub.f32 1.0, %v49
    %v127 = vsub.f32 1.0, %v50
    %v128 = vlog2.pop %v124
    %v129 = vmul.f32 %v128, 0.6931472
    %v130 = vlog2.pop %v125
    %v131 = vmul.f32 %v130, 0.6931472
    %v132 = vlog2.pop %v126
    %v133 = vmul.f32 %v132, 0.6931472
    %v134 = vlog2.pop %v127
    %v135 = vmul.f32 %v134, 0.6931472
    %v136 = vmax.f32 %v129, -100.0
    %v137 = vmax.f32 %v131, -100.0
    %v138 = vmax.f32 %v133, -100.0
    %v139 = vmax.f32 %v135, -100.0
    %v140 = vmul.f32 %v62, %v120
    %v141 = vmul.f32 %v63, %v121
    %v142 = vmul.f32 %v64, %v122
    %v143 = vmul.f32 %v65, %v123
    %v144 = vsub.f32 1.0, %v62
    %v145 = vsub.f32 1.0, %v63
    %v146 = vsub.f32 1.0, %v64
    %v147 = vsub.f32 1.0, %v65
    %v148 = vmul.f32 %v144, %v136
    %v149 = vmul.f32 %v145, %v137
    %v150 = vmul.f32 %v146, %v138
    %v151 = vmul.f32 %v147, %v139
    %v152 = vadd.f32 %v140, %v148
    %v153 = vadd.f32 %v141, %v149
    %v154 = vadd.f32 %v142, %v150
    %v155 = vadd.f32 %v143, %v151
    %v156 = vsub.f32 0.0, %v152
    %v157 = vsub.f32 0.0, %v153
    %v158 = vsub.f32 0.0, %v154
    %v159 = vsub.f32 0.0, %v155
    %v160 = vlog2.pop %v54
    %v161 = vmul.f32 %v160, 0.6931472
    %v162 = vlog2.pop %v55
    %v163 = vmul.f32 %v162, 0.6931472
    %v164 = vlog2.pop %v56
    %v165 = vmul.f32 %v164, 0.6931472
    %v166 = vlog2.pop %v57
    %v167 = vmul.f32 %v166, 0.6931472
    %v168 = vmax.f32 %v161, -100.0
    %v169 = vmax.f32 %v163, -100.0
    %v170 = vmax.f32 %v165, -100.0
    %v171 = vmax.f32 %v167, -100.0
    %v172 = vsub.f32 1.0, %v54
    %v173 = vsub.f32 1.0, %v55
    %v174 = vsub.f32 1.0, %v56
    %v175 = vsub.f32 1.0, %v57
    %v176 = vlog2.pop %v172
    %v177 = vmul.f32 %v176, 0.6931472
    %v178 = vlog2.pop %v173
    %v179 = vmul.f32 %v178, 0.6931472
    %v180 = vlog2.pop %v174
    %v181 = vmul.f32 %v180, 0.6931472
    %v182 = vlog2.pop %v175
    %v183 = vmul.f32 %v182, 0.6931472
    %v184 = vmax.f32 %v177, -100.0
    %v185 = vmax.f32 %v179, -100.0
    %v186 = vmax.f32 %v181, -100.0
    %v187 = vmax.f32 %v183, -100.0
    %v188 = vmul.f32 %v70, %v168
    %v189 = vmul.f32 %v71, %v169
    %v190 = vmul.f32 %v72, %v170
    %v191 = vmul.f32 %v73, %v171
    %v192 = vsub.f32 1.0, %v70
    %v193 = vsub.f32 1.0, %v71
    %v194 = vsub.f32 1.0, %v72
    %v195 = vsub.f32 1.0, %v73
    %v196 = vmul.f32 %v192, %v184
    %v197 = vmul.f32 %v193, %v185
    %v198 = vmul.f32 %v194, %v186
    %v199 = vmul.f32 %v195, %v187
    %v200 = vadd.f32 %v188, %v196
    %v201 = vadd.f32 %v189, %v197
    %v202 = vadd.f32 %v190, %v198
    %v203 = vadd.f32 %v191, %v199
    %v204 = vsub.f32 0.0, %v200
    %v205 = vsub.f32 0.0, %v201
    %v206 = vsub.f32 0.0, %v202
    %v207 = vsub.f32 0.0, %v203
    %v208 = vadd.f32 %v156, %v204
    %v209 = vadd.f32 %v157, %v205
    %v210 = vadd.f32 %v158, %v206
    %v211 = vadd.f32 %v159, %v207
    %v212 = vmul.f32 %v108, %v208
    %v213 = vmul.f32 %v109, %v209
    %v214 = vmul.f32 %v110, %v210
    %v215 = vmul.f32 %v111, %v211
    %v216 = vadd.f32 %v212, 0.0
    %v217 = vadd.f32 %v213, 0.0
    %v218 = vadd.f32 %v214, 0.0
    %v219 = vadd.f32 %v215, 0.0
    %v220 = vadd.f32 %v216, %v218
    %v221 = vadd.f32 %v217, %v219
    %v222 = vadd.f32 %v220, %v221
    %223 = vst [vmem:[#allocation7] sm:$0xff] %v222
    // Predicated region
    $region18: #{tpu_custom_call.1} parent=1 // pred_check
      _
    $region19: #{tpu_custom_call.1} parent=1 // pred_check_branch
      %225 = sbr.rel (0) target = $region21
    $region20: #{tpu_custom_call.1} parent=1 // pred_region
      %227 = vsyncadd [#allocation4], 0
      %s229 = sshll.u32 [#allocation7], 4
      %s230 = int_to_ptr.vmem [resolvable:$true] %s229
      %s231 = sshll.u32 %s2, 4
      %s232 = int_to_ptr.hbm [resolvable:$true] %s231
      %234 = dma.vmem_to_hbm [thread:$0]  %s230, 128, %s232, [#allocation4]
    $region21: #{tpu_custom_call.1} parent=1 // pred_fallthru
      _
    // Predicated region
    $region22: #{tpu_custom_call.1} parent=1 // pred_check
      _
    $region23: #{tpu_custom_call.1} parent=1 // pred_check_branch
      %236 = sbr.rel (0) target = $region25
    $region24: #{tpu_custom_call.1} parent=1 // pred_region
      %238 = dma.done [#allocation4], 128
    $region25: #{tpu_custom_call.1} parent=1 // pred_fallthru
      _
    %239 = vsyncpa [#allocation3], 1
    %240 = vsyncpa [#allocation6], 1
    %241 = vsyncpa [#allocation4], 1

</llo_original>
